<compile_context>
chip_gen: v6e
topology: v6e:2x2x1
jax: 0.10.0
libtpu: 0.0.40
codegen_flags: <defaults>
</compile_context>

<pallas_src>
import math
import jax
import jax.numpy as jnp
from jax.experimental import pallas as pl
from jax.experimental.pallas import tpu as pltpu


def _round_up(x: int, m: int) -> int:
    return ((x + m - 1) // m) * m


def _cdiv(a: int, b: int) -> int:
    return -(-a // b)


def _choose_tk(K: int, tile_k: int):
    """Pick a K tile (multiple of 128, <= tile_k) minimizing zero-padding of K."""
    tile_k = max(128, _round_up(tile_k, 128))
    K128 = _round_up(K, 128)
    if K128 <= tile_k:
        # K fits a single tile -> collapse the K grid axis entirely.
        return K128, K128
    steps = _cdiv(K128, tile_k)
    tk = _round_up(_cdiv(K128, steps), 128)
    return tk, tk * steps


def _make_linear_kernel(has_bias: bool):
    """Kernel: o[i,j] = sum_k x[i,k] @ w[k,j] (+ bias[j]) with f32 accumulation
    directly into the resident output block."""
    if has_bias:
        def kernel(x_ref, w_ref, b_ref, o_ref):
            k = pl.program_id(2)

            @pl.when(k == 0)
            def _init():
                o_ref[...] = jnp.zeros_like(o_ref)

            o_ref[...] += jnp.dot(
                x_ref[...], w_ref[...], preferred_element_type=jnp.float32
            )

            @pl.when(k == pl.num_programs(2) - 1)
            def _epilogue():
                o_ref[...] += b_ref[...].astype(o_ref.dtype)

        return kernel

    def kernel(x_ref, w_ref, o_ref):
        k = pl.program_id(2)

        @pl.when(k == 0)
        def _init():
            o_ref[...] = jnp.zeros_like(o_ref)

        o_ref[...] += jnp.dot(
            x_ref[...], w_ref[...], preferred_element_type=jnp.float32
        )

    return kernel


def prepare_pcm_linear_weight(weight, *, use_bf16: bool = False, tile_k: int = 1024):
    """One-time weight preparation (cache the result and pass as weight_kn=).

    Transposes the PyTorch-layout (out_channel, in_channel) weight to (K, N)
    (lane-dense in N, native MXU orientation), optionally casts to bf16, and
    zero-pads K to the tile multiple the kernel will use. Doing this once at
    init removes a full weight HBM round trip from every forward call.
    """
    out_channel, in_channel = weight.shape
    _, K_pad = _choose_tk(in_channel, tile_k)
    w_kn = jnp.transpose(weight)                      # (K, N)
    if use_bf16:
        w_kn = w_kn.astype(jnp.bfloat16)
    if K_pad != in_channel:
        w_kn = jnp.pad(w_kn, ((0, K_pad - in_channel), (0, 0)))
    return w_kn


def pcm_linear_forward(
    x,
    weight=None,
    bias=None,
    *,
    weight_kn=None,
    tile_m: int = 512,
    tile_n: int = 512,
    tile_k: int = 1024,
    use_bf16: bool = False,
):
    """Forward of PCMLinear (default config): out = x @ weight.T (+ bias).

    x:         (..., in_channel) float32
    weight:    (out_channel, in_channel) float32 (PyTorch Parameter layout);
               may be omitted if weight_kn is given.
    weight_kn: cached result of prepare_pcm_linear_weight (pre-transposed,
               optionally bf16, K-padded) -> no per-call weight transpose/pad.
    bias:      optional (out_channel,) float32, fused into the kernel epilogue.
    use_bf16:  cast inputs to bf16 for the MXU (f32 accumulation). Faster but
               numerics-visible vs the fp32 PyTorch reference -> off by default.
    """
    in_channel = x.shape[-1]
    lead_shape = x.shape[:-1]
    x2d = x.reshape(-1, in_channel)
    M, K = x2d.shape

    compute_dtype = jnp.bfloat16 if use_bf16 else jnp.float32

    tile_m = max(8, _round_up(tile_m, 8))
    tile_n = max(128, _round_up(tile_n, 128))
    tk, K_pad = _choose_tk(K, tile_k)

    # --- weight: prefer the cached pre-transposed path ---
    if weight_kn is None:
        if weight is None:
            raise ValueError("pass either `weight` or `weight_kn`")
        assert weight.shape[1] == in_channel
        weight_kn = prepare_pcm_linear_weight(weight, use_bf16=use_bf16, tile_k=tile_k)
    N = weight_kn.shape[1]
    if weight_kn.dtype != compute_dtype:
        weight_kn = weight_kn.astype(compute_dtype)
    if weight_kn.shape[0] == K_pad:
        pass
    elif weight_kn.shape[0] == K:
        if K_pad != K:
            weight_kn = jnp.pad(weight_kn, ((0, K_pad - K), (0, 0)))
    else:
        raise ValueError(
            f"weight_kn K dim {weight_kn.shape[0]} matches neither in_channel "
            f"{K} nor padded {K_pad}"
        )

    # --- x: only K needs zero-padding (exact for the contraction). M/N ragged
    # edges are handled by Pallas edge-block clipping + masked output writeback.
    if x2d.dtype != compute_dtype:
        x2d = x2d.astype(compute_dtype)
    if K_pad != K:
        x2d = jnp.pad(x2d, ((0, 0), (0, K_pad - K)))

    # --- tiles / grid ---
    tm = min(tile_m, _round_up(M, 8))
    tn = min(tile_n, _round_up(N, 128))
    grid_m = _cdiv(M, tm)
    grid_n = _cdiv(N, tn)
    # v7x megacore: keep >=2 parallel output blocks so both TensorCores get work.
    while grid_m * grid_n < 2 and tn > 128:
        tn = max(128, _round_up(tn // 2, 128))
        grid_n = _cdiv(N, tn)
    while grid_m * grid_n < 2 and tm > 8:
        tm = max(8, _round_up(tm // 2, 8))
        grid_m = _cdiv(M, tm)
    grid_k = K_pad // tk
    grid = (grid_m, grid_n, grid_k)

    has_bias = bias is not None
    in_specs = [
        pl.BlockSpec((tm, tk), lambda i, j, k: (i, k)),   # x tile
        pl.BlockSpec((tk, tn), lambda i, j, k: (k, j)),   # weight.T tile (lane-dense N)
    ]
    args = [x2d, weight_kn]
    if has_bias:
        in_specs.append(pl.BlockSpec((1, tn), lambda i, j, k: (0, j)))
        args.append(jnp.asarray(bias, jnp.float32).reshape(1, N))

    # --- VMEM budget: double-buffered inputs + double-buffered f32 output tile.
    in_itemsize = jnp.dtype(compute_dtype).itemsize
    vmem_est = 2 * (tm * tk + tk * tn) * in_itemsize + 2 * tm * tn * 4
    if has_bias:
        vmem_est += 2 * tn * 4
    # >=32 MiB (default scoped) but clamp to 48 MiB so v7x's 64 MiB/TC keeps headroom.
    vmem_limit = int(min(max(32 * 1024 * 1024, (vmem_est * 3) // 2), 48 * 1024 * 1024))

    out2d = pl.pallas_call(
        _make_linear_kernel(has_bias),
        out_shape=jax.ShapeDtypeStruct((M, N), jnp.float32),
        grid_spec=pltpu.PrefetchScalarGridSpec(
            num_scalar_prefetch=0,
            grid=grid,
            in_specs=in_specs,
            out_specs=pl.BlockSpec((tm, tn), lambda i, j, k: (i, j)),
        ),
        compiler_params=pltpu.CompilerParams(
            dimension_semantics=("parallel", "parallel", "arbitrary"),
            vmem_limit_bytes=vmem_limit,
        ),
    )(*args)

    return out2d.reshape(*lead_shape, N)


def init_pcm_linear_weight(key, in_channel, out_channel):
    """kaiming_normal_(mode='fan_out', nonlinearity='relu') for the
    (out_channel, in_channel) weight, matching reset_parameters()."""
    fan_out = out_channel
    std = math.sqrt(2.0) / math.sqrt(fan_out)
    return std * jax.random.normal(key, (out_channel, in_channel), dtype=jnp.float32)


if __name__ == "__main__":
    key = jax.random.PRNGKey(0)

    # Case 1: aligned small shapes, default f32 path (matches PyTorch fp32 ref).
    batch, seq, in_channel, out_channel = 2, 8, 128, 256
    kx, kw = jax.random.split(key)
    x = jax.random.normal(kx, (batch, seq, in_channel), dtype=jnp.float32)
    weight = init_pcm_linear_weight(kw, in_channel, out_channel)

    out = pcm_linear_forward(x, weight)
    out = jax.block_until_ready(out)
    ref = jnp.einsum("bsk,nk->bsn", x, weight)
    assert out.shape == (batch, seq, out_channel)
    assert jnp.allclose(out, ref, atol=1e-4, rtol=1e-4)

    # Case 2: non-divisible shapes + fused bias (edge blocks, no M/N padding).
    batch2, seq2, in2, out2c = 2, 7, 100, 200
    kx2, kw2, kb2 = jax.random.split(jax.random.PRNGKey(1), 3)
    x2 = jax.random.normal(kx2, (batch2, seq2, in2), dtype=jnp.float32)
    weight2 = init_pcm_linear_weight(kw2, in2, out2c)
    bias2 = 0.1 * jax.random.normal(kb2, (out2c,), dtype=jnp.float32)

    out2 = pcm_linear_forward(x2, weight2, bias2)
    out2 = jax.block_until_ready(out2)
    ref2 = jnp.einsum("bsk,nk->bsn", x2, weight2) + bias2
    assert out2.shape == (batch2, seq2, out2c)
    assert jnp.allclose(out2, ref2, atol=1e-4, rtol=1e-4)

    # Case 3: bf16 MXU fast path with a cached pre-transposed/padded weight.
    w_kn = prepare_pcm_linear_weight(weight, use_bf16=True)
    out3 = pcm_linear_forward(x, weight_kn=w_kn, use_bf16=True)
    out3 = jax.block_until_ready(out3)
    assert out3.shape == (batch, seq, out_channel)
    assert jnp.allclose(out3, ref, atol=3e-2, rtol=3e-2)

    print("KERNEL_OK")
</pallas_src>

<mosaic_0001>
module attributes {stable_mosaic.version = 11 : i64} {
  func.func @kernel(%arg0: i32, %arg1: i32, %arg2: i32, %arg3: memref<16x128xf32, #tpu.memory_space<vmem>>, %arg4: memref<128x128xf32, #tpu.memory_space<vmem>>, %arg5: memref<16x128xf32, #tpu.memory_space<vmem>>) attributes {dimension_semantics = [#tpu.dimension_semantics<parallel>, #tpu.dimension_semantics<parallel>, #tpu.dimension_semantics<arbitrary>], iteration_bounds = array<i64: 1, 2, 1>, scalar_prefetch = 0 : i64, scratch_operands = 0 : i64, tpu.core_type = #tpu.core_type<tc>, window_params = [{transform_indices = @transform_0, window_bounds = array<i64: 16, 128>}, {transform_indices = @transform_1, window_bounds = array<i64: 128, 128>}, {transform_indices = @transform_2, window_bounds = array<i64: 16, 128>}]} {
    %c0_i32 = arith.constant 0 : i32
    %0 = arith.cmpi eq, %arg2, %c0_i32 : i32
    %1 = arith.extui %0 : i1 to i32
    %c0_i32_0 = arith.constant 0 : i32
    %2 = arith.cmpi ne, %1, %c0_i32_0 : i32
    scf.if %2 {
      %cst_8 = arith.constant 0.000000e+00 : f32
      %9 = vector.broadcast %cst_8 : f32 to vector<16x128xf32>
      %c0_9 = arith.constant 0 : index
      %c0_10 = arith.constant 0 : index
      %10 = vector.load %arg5[%c0_9, %c0_10] : memref<16x128xf32, #tpu.memory_space<vmem>>, vector<16x128xf32>
      tpu.vector_store %arg5[%c0_9, %c0_10], %9 {strides = array<i32>} : memref<16x128xf32, #tpu.memory_space<vmem>>, vector<16x128xf32>,
    } else {
    }
    %c0 = arith.constant 0 : index
    %c0_1 = arith.constant 0 : index
    %3 = vector.load %arg5[%c0, %c0_1] : memref<16x128xf32, #tpu.memory_space<vmem>>, vector<16x128xf32>
    %c0_2 = arith.constant 0 : index
    %c0_3 = arith.constant 0 : index
    %4 = vector.load %arg3[%c0_2, %c0_3] : memref<16x128xf32, #tpu.memory_space<vmem>>, vector<16x128xf32>
    %c0_4 = arith.constant 0 : index
    %c0_5 = arith.constant 0 : index
    %5 = vector.load %arg4[%c0_4, %c0_5] : memref<128x128xf32, #tpu.memory_space<vmem>>, vector<128x128xf32>
    %cst = arith.constant dense<0.000000e+00> : vector<16x128xf32>
    %6 = tpu.matmul %4, %5, %cst {dimension_numbers = #tpu.dot_dimension_numbers<[1], [0], [0], [1], [0, 0, 1, 1], [], []>} : vector<16x128xf32>, vector<128x128xf32>, vector<16x128xf32> -> vector<16x128xf32>
    %7 = arith.addf %3, %6 : vector<16x128xf32>
    %c0_6 = arith.constant 0 : index
    %c0_7 = arith.constant 0 : index
    %8 = vector.load %arg5[%c0_6, %c0_7] : memref<16x128xf32, #tpu.memory_space<vmem>>, vector<16x128xf32>
    tpu.vector_store %arg5[%c0_6, %c0_7], %7 {strides = array<i32>} : memref<16x128xf32, #tpu.memory_space<vmem>>, vector<16x128xf32>,
    return
  }
  func.func @transform_0(%arg0: i32, %arg1: i32, %arg2: i32) -> (i32, i32) {
    %c0_i32 = arith.constant 0 : i32
    return %arg0, %arg2 : i32, i32
  }
  func.func @transform_1(%arg0: i32, %arg1: i32, %arg2: i32) -> (i32, i32) {
    %c0_i32 = arith.constant 0 : i32
    return %arg2, %arg1 : i32, i32
  }
  func.func @transform_2(%arg0: i32, %arg1: i32, %arg2: i32) -> (i32, i32) {
    %c0_i32 = arith.constant 0 : i32
    return %arg0, %arg1 : i32, i32
  }
}

</mosaic_0001>

<llo_original>
// kernel: tpu_custom_call.1
$region0: #{tpu_custom_call.1}
  #allocation0 [shape = 'u32[]', space=smem, size = 0x4, offset = 0x4, fixed_abs, tag = 'smem constant byte address 0x4 - core index']
  #allocation1 [shape = 'u32[144,128]{1,0:T(1,128)}', space=vmem, size = 0x12000, scoped, tag = 'internal scratch']
  %s0 = inlined_call_operand.hbm [shape: f32[16,128], index: 0, kind: input, shape index: {}]
  %s1 = inlined_call_operand.hbm [shape: f32[128,256], index: 1, kind: input, shape index: {}]
  %s2 = inlined_call_operand.hbm [shape: f32[16,256], index: 2, kind: output, shape index: {}]
  %s3 = sld [smem:[#allocation0]]
  $region53: #{tpu_custom_call.1} parent=0
    _
  %s5 = ssub.s32 1, %s3
  %s6 = scalar_select 0, %s5, %s3
  $region1: #{tpu_custom_call.1} parent=0
    #allocation2 [shape = 'u8[8192]{0}', space=vmem, size = 0x2000, scoped, tag = 'input window, operand 0, single buffered']
    #allocation3 [shape = 's32[2]{0}', space=sflag, size = 0x8, scoped, tag = 'scoped memory for tpu_custom_call.1']
    #allocation4 [shape = 's32[2]{0}', space=sflag, size = 0x8, scoped, tag = 'scoped memory for tpu_custom_call.1']
    #allocation5 [shape = 'u8[131072]{0}', space=vmem, size = 0x20000, scoped, tag = 'input window, operand 1']
    #allocation6 [shape = 's32[2]{0}', space=sflag, size = 0x8, scoped, tag = 'scoped memory for tpu_custom_call.1']
    #allocation7 [shape = 'u8[16384]{0}', space=vmem, size = 0x4000, scoped, tag = 'output window, operand 0']
    %7 = vsyncpa [#allocation3], 0
    %8 = vsyncpa [#allocation6], 0
    %s9 = scalar_lea.sflag [#allocation6], 1
    %10 = vsyncpa %s9, 0
    %11 = vsyncpa [#allocation4], 0
    %s12 = scalar_lea.sflag [#allocation4], 1
    %13 = vsyncpa %s12, 0
    loop: start=0, step=1, limit=4
    $region2: #{tpu_custom_call.1} parent=1 // loop_pre_header
      _
    $region3: #{tpu_custom_call.1} parent=1 // loop_header
      %s15 = sphi 0, %s19
      %p16 = scmp.ge.s32.totalorder %s15, 4
      %s22 = sphi 0, %s41
      %s23 = sphi 0, %s37
      %s24 = sphi 0, %s33
      %s25 = sphi 0, %s22
      %s26 = sphi 0, %s23
      %s27 = sphi 0, %s24
      %s28 = sphi 0, %s25
      %s29 = sphi 0, %s26
      %s30 = sphi 0, %s27
      %s46 = sphi 0, %s48
      %s49 = sphi 0, %s46
      %s50 = sphi 0, %s49
      %s66 = sphi 0, %s50
      %s74 = sphi 0, %s76
      %s77 = sphi 0, %s74
      %s78 = sphi 0, %s77
      %s94 = sphi 0, %s78
      %s102 = sphi 0, %s104
      %s105 = sphi 0, %s102
      %s106 = sphi 0, %s105
      %s122 = sphi 0, %s106
    $region4: #{tpu_custom_call.1} parent=1 // loop_header_branch
      %18 = sbr.rel (%p16) target = $region8
    $region5: #{tpu_custom_call.1} parent=1 // loop_body
      %s20 = ssub.s32 %s15, 1
      %s21 = ssub.s32 %s15, 2
      %s31 = sadd.s32 1, %s24
      %p32 = scmp.ge.s32.totalorder %s31, 1
      %s33 = scalar_select %p32, 0, %s31
      %s34 = sadd.s32 1, %s23
      %s35 = scalar_select %p32, %s34, %s23
      %p36 = scmp.ge.s32.totalorder %s35, 2
      %s37 = scalar_select %p36, 0, %s35
      %s38 = sadd.s32 1, %s22
      %s39 = scalar_select %p36, %s38, %s22
      %p40 = scmp.ge.s32.totalorder %s39, 1
      %s41 = scalar_select %p40, 0, %s39
      %s42 = ssub.s32 %s22, %s41
      %s43 = ssub.s32 %s24, %s33
      %s44 = sor.u32 %s42, %s43
      %p45 = scmp.eq.s32.totalorder %s44, 0
      %s47 = sadd.s32 %s46, 1
      %s48 = scalar_select %p45, %s46, %s47
      %p51 = pneg %p45
      %p52 = scmp.eq.s32.totalorder %s15, 1
      %p53 = por %p51, %p52
      %p54 = scmp.ne.s32.totalorder %s46, %s49
      %p55 = scmp.eq.s32.totalorder %s15, 0
      %p56 = por %p54, %p55
      %p57 = scmp.ne.s32.totalorder %s46, %s49
      %p58 = scmp.eq.s32.totalorder %s20, 1
      %p59 = por %p57, %p58
      %p60 = scmp.ne.s32.totalorder %s49, %s50
      %p61 = scmp.eq.s32.totalorder %s20, 0
      %p62 = por %p60, %p61
      %p63 = scmp.ne.s32.totalorder %s49, %s50
      %p64 = scmp.eq.s32.totalorder %s21, 1
      %p65 = por %p63, %p64
      %p67 = scmp.ne.s32.totalorder %s50, %s66
      %p68 = scmp.eq.s32.totalorder %s21, 0
      %p69 = por %p67, %p68
      %s70 = ssub.s32 %s24, %s33
      %s71 = ssub.s32 %s23, %s37
      %s72 = sor.u32 %s70, %s71
      %p73 = scmp.eq.s32.totalorder %s72, 0
      %s75 = sadd.s32 %s74, 1
      %s76 = scalar_select %p73, %s74, %s75
      %p79 = pneg %p73
      %p80 = scmp.eq.s32.totalorder %s15, 1
      %p81 = por %p79, %p80
      %p82 = scmp.ne.s32.totalorder %s74, %s77
      %p83 = scmp.eq.s32.totalorder %s15, 0
      %p84 = por %p82, %p83
      %p85 = scmp.ne.s32.totalorder %s74, %s77
      %p86 = scmp.eq.s32.totalorder %s20, 1
      %p87 = por %p85, %p86
      %p88 = scmp.ne.s32.totalorder %s77, %s78
      %p89 = scmp.eq.s32.totalorder %s20, 0
      %p90 = por %p88, %p89
      %p91 = scmp.ne.s32.totalorder %s77, %s78
      %p92 = scmp.eq.s32.totalorder %s21, 1
      %p93 = por %p91, %p92
      %p95 = scmp.ne.s32.totalorder %s78, %s94
      %p96 = scmp.eq.s32.totalorder %s21, 0
      %p97 = por %p95, %p96
      %s98 = ssub.s32 %s22, %s41
      %s99 = ssub.s32 %s23, %s37
      %s100 = sor.u32 %s98, %s99
      %p101 = scmp.eq.s32.totalorder %s100, 0
      %s103 = sadd.s32 %s102, 1
      %s104 = scalar_select %p101, %s102, %s103
      %p107 = pneg %p101
      %p108 = scmp.eq.s32.totalorder %s15, 1
      %p109 = por %p107, %p108
      %p110 = scmp.ne.s32.totalorder %s102, %s105
      %p111 = scmp.eq.s32.totalorder %s15, 0
      %p112 = por %p110, %p111
      %p113 = scmp.ne.s32.totalorder %s102, %s105
      %p114 = scmp.eq.s32.totalorder %s20, 1
      %p115 = por %p113, %p114
      %p116 = scmp.ne.s32.totalorder %s105, %s106
      %p117 = scmp.eq.s32.totalorder %s20, 0
      %p118 = por %p116, %p117
      %p119 = scmp.ne.s32.totalorder %s105, %s106
      %p120 = scmp.eq.s32.totalorder %s21, 1
      %p121 = por %p119, %p120
      %p123 = scmp.ne.s32.totalorder %s106, %s122
      %p124 = scmp.eq.s32.totalorder %s21, 0
      %p125 = por %p123, %p124
      %p126 = scmp.le.s32.totalorder 1, %s15
      %p127 = scmp.lt.s32.totalorder %s15, 3
      %p128 = pnand %p126, %p127
      %p129 = pneg %p128
      // Predicated region
      $region9: #{tpu_custom_call.1} parent=5 // pred_check
        _
      $region10: #{tpu_custom_call.1} parent=5 // pred_check_branch
        %131 = sbr.rel (%p128) target = $region12
      $region11: #{tpu_custom_call.1} parent=5 // pred_region
        %s132 = ssub.s32 %s15, 1
        // Predicated region
        $region13: #{tpu_custom_call.1} parent=11 // pred_check
          %p133 = pneg %p62
        $region14: #{tpu_custom_call.1} parent=11 // pred_check_branch
          %135 = sbr.rel (%p133) target = $region16
        $region15: #{tpu_custom_call.1} parent=11 // pred_region
          %s136 = smul.u32 2, %s25
          %s138 = ssub.s32 256, 256
          %139 = vsyncadd [#allocation3], %s138
          %s140 = sadd.s32 %s27, %s136
          %s141 = smul.addr %s140, 128
          %s142 = scalar_lea.hbm %s0, %s141
          %s143 = sshll.u32 [#allocation2], 4
          %s144 = int_to_ptr.vmem [resolvable:$true] %s143
          %149 = dma.hbm_to_vmem [thread:$0]  %s142, 256, %s144, [#allocation3], 128, 128, 8
        $region16: #{tpu_custom_call.1} parent=11 // pred_fallthru
          _
      $region12: #{tpu_custom_call.1} parent=5 // pred_fallthru
        _
      %p150 = scmp.lt.s32.totalorder %s15, 2
      // Predicated region
      $region17: #{tpu_custom_call.1} parent=5 // pred_check
        %p151 = pneg %p150
      $region18: #{tpu_custom_call.1} parent=5 // pred_check_branch
        %153 = sbr.rel (%p151) target = $region20
      $region19: #{tpu_custom_call.1} parent=5 // pred_region
        // Predicated region
        $region21: #{tpu_custom_call.1} parent=19 // pred_check
          %p154 = pneg %p84
        $region22: #{tpu_custom_call.1} parent=19 // pred_check_branch
          %156 = sbr.rel (%p154) target = $region24
        $region23: #{tpu_custom_call.1} parent=19 // pred_region
          %s157 = sand.u32 %s74, 1
          %s158 = scalar_lea.sflag [#allocation6], %s157
          %s159 = sand.u32 %s74, 1
          %s160 = smul.addr %s159, 128
          %s161 = scalar_lea.vmem [#allocation5], %s160
          %s162 = smul.u32 16, %s24
          %s164 = ssub.s32 2048, 2048
          %165 = vsyncadd %s158, %s164
          %s166 = smul.addr %s162, 2
          %s167 = sadd.s32 %s23, %s166
          %s168 = smul.addr %s167, 128
          %s169 = scalar_lea.hbm %s1, %s168
          %s170 = sshll.u32 %s161, 4
          %s171 = int_to_ptr.vmem [resolvable:$true] %s170
          %176 = dma.hbm_to_vmem [thread:$0]  %s169, 2048, %s171, %s158, 256, 128, 8
        $region24: #{tpu_custom_call.1} parent=19 // pred_fallthru
          _
      $region20: #{tpu_custom_call.1} parent=5 // pred_fallthru
        _
      %p177 = scmp.le.s32.totalorder 1, %s15
      %p178 = scmp.lt.s32.totalorder %s15, 3
      %p179 = pnand %p177, %p178
      %p180 = pneg %p179
      // Predicated region
      $region25: #{tpu_custom_call.1} parent=5 // pred_check
        _
      $region26: #{tpu_custom_call.1} parent=5 // pred_check_branch
        %182 = sbr.rel (%p179) target = $region28
      $region27: #{tpu_custom_call.1} parent=5 // pred_region
        %s183 = ssub.s32 %s15, 1
        // Predicated region
        $region29: #{tpu_custom_call.1} parent=27 // pred_check
          %p184 = pneg %p62
        $region30: #{tpu_custom_call.1} parent=27 // pred_check_branch
          %186 = sbr.rel (%p184) target = $region32
        $region31: #{tpu_custom_call.1} parent=27 // pred_region
          %187 = dma.done [#allocation3], 256
        $region32: #{tpu_custom_call.1} parent=27 // pred_fallthru
          _
        %s188 = sand.u32 %s77, 1
        %s189 = scalar_lea.sflag [#allocation6], %s188
        %s190 = sand.u32 %s77, 1
        %s191 = smul.addr %s190, 128
        %s192 = scalar_lea.vmem [#allocation5], %s191
        // Predicated region
        $region33: #{tpu_custom_call.1} parent=27 // pred_check
          %p193 = pneg %p90
        $region34: #{tpu_custom_call.1} parent=27 // pred_check_branch
          %195 = sbr.rel (%p193) target = $region36
        $region35: #{tpu_custom_call.1} parent=27 // pred_region
          %196 = dma.done %s189, 2048
        $region36: #{tpu_custom_call.1} parent=27 // pred_fallthru
          _
        %p197 = pneg %p62
        %p198 = pneg %p59
        %s199 = sand.u32 %s77, 1
        %s200 = scalar_lea.sflag [#allocation6], %s199
        %s201 = sand.u32 %s77, 1
        %s202 = smul.addr %s201, 128
        %s203 = scalar_lea.vmem [#allocation5], %s202
        %p204 = pneg %p90
        %p205 = pneg %p87
        %p206 = pneg %p118
        %p207 = pneg %p115
        %s208 = sand.u32 %s105, 1
        %s209 = scalar_lea.sflag [#allocation4], %s208
        %s210 = sand.u32 %s105, 1
        %s211 = smul.addr %s210, 16
        %s212 = scalar_lea.vmem [#allocation7], %s211
        %s213 = smul.u32 2, %s25
        %s214 = smul.u32 16, %s27
        %s215 = smul.u32 2, %s25
        %p216 = scmp.eq.s32.totalorder %s27, 0
        // Predicated region
        $region37: #{tpu_custom_call.1} parent=27 // pred_check
          %p217 = pneg %p216
        $region38: #{tpu_custom_call.1} parent=27 // pred_check_branch
          %219 = sbr.rel (%p217) target = $region40
        $region39: #{tpu_custom_call.1} parent=27 // pred_region
          %220 = vst [vmem:[%s212] sm:$0xff] 0.0
          %221 = vst [vmem:[%s212 + $0x8] sm:$0xff] 0.0
        $region40: #{tpu_custom_call.1} parent=27 // pred_fallthru
          _
        %v222 = vld [vmem:[%s212] sm:$0xff]
        %v223 = vld [vmem:[%s212 + $0x8] sm:$0xff]
        %v224 = vld [vmem:[#allocation2] sm:$0xff]
        %v225 = vld [vmem:[#allocation2 + $0x8] sm:$0xff]
        %v226 = vld [vmem:[%s192] sm:$0xff]
        %v227 = vld [vmem:[%s192 + $0x8] sm:$0xff]
        %v228 = vld [vmem:[%s192 + $0x10] sm:$0xff]
        %v229 = vld [vmem:[%s192 + $0x18] sm:$0xff]
        %v230 = vld [vmem:[%s192 + $0x20] sm:$0xff]
        %v231 = vld [vmem:[%s192 + $0x28] sm:$0xff]
        %v232 = vld [vmem:[%s192 + $0x30] sm:$0xff]
        %v233 = vld [vmem:[%s192 + $0x38] sm:$0xff]
        %v234 = vld [vmem:[%s192 + $0x40] sm:$0xff]
        %v235 = vld [vmem:[%s192 + $0x48] sm:$0xff]
        %v236 = vld [vmem:[%s192 + $0x50] sm:$0xff]
        %v237 = vld [vmem:[%s192 + $0x58] sm:$0xff]
        %v238 = vld [vmem:[%s192 + $0x60] sm:$0xff]
        %v239 = vld [vmem:[%s192 + $0x68] sm:$0xff]
        %v240 = vld [vmem:[%s192 + $0x70] sm:$0xff]
        %v241 = vld [vmem:[%s192 + $0x78] sm:$0xff]
        %242 = vmatprep.subr.mxu0 0.0
        %243 = vmatpush1.msra.mxu0 %v241
        %244 = vmatprep.subr.mxu0 0.0
        %245 = vmatpush1.msra.mxu0 %v240
        %246 = vmatprep.subr.mxu0 0.0
        %247 = vmatpush1.msra.mxu0 %v239
        %248 = vmatprep.subr.mxu0 0.0
        %249 = vmatpush1.msra.mxu0 %v238
        %250 = vmatprep.subr.mxu0 0.0
        %251 = vmatpush1.msra.mxu0 %v237
        %252 = vmatprep.subr.mxu0 0.0
        %253 = vmatpush1.msra.mxu0 %v236
        %254 = vmatprep.subr.mxu0 0.0
        %255 = vmatpush1.msra.mxu0 %v235
        %256 = vmatprep.subr.mxu0 0.0
        %257 = vmatpush1.msra.mxu0 %v234
        %258 = vmatprep.subr.mxu0 0.0
        %259 = vmatpush1.msra.mxu0 %v233
        %260 = vmatprep.subr.mxu0 0.0
        %261 = vmatpush1.msra.mxu0 %v232
        %262 = vmatprep.subr.mxu0 0.0
        %263 = vmatpush1.msra.mxu0 %v231
        %264 = vmatprep.subr.mxu0 0.0
        %265 = vmatpush1.msra.mxu0 %v230
        %266 = vmatprep.subr.mxu0 0.0
        %267 = vmatpush1.msra.mxu0 %v229
        %268 = vmatprep.subr.mxu0 0.0
        %269 = vmatpush1.msra.mxu0 %v228
        %270 = vmatprep.subr.mxu0 0.0
        %271 = vmatpush1.msra.mxu0 %v227
        %272 = vmatprep.subr.mxu0 0.0
        %273 = vmatpush1.msra.mxu0 %v226
        %274 = vmatprep.subr.mxu0 0.0
        %275 = vmatpush2.msra.mxu0 0.0
        %276 = vmatprep.subr.mxu0 0.0
        %277 = vmatpush2.msra.mxu0 0.0
        %278 = vmatprep.subr.mxu0 0.0
        %279 = vmatpush2.msra.mxu0 0.0
        %280 = vmatprep.subr.mxu0 0.0
        %281 = vmatpush2.msra.mxu0 0.0
        %282 = vmatprep.subr.mxu0 0.0
        %283 = vmatpush2.msra.mxu0 0.0
        %284 = vmatprep.subr.mxu0 0.0
        %285 = vmatpush2.msra.mxu0 0.0
        %286 = vmatprep.subr.mxu0 0.0
        %287 = vmatpush2.msra.mxu0 0.0
        %288 = vmatprep.subr.mxu0 0.0
        %289 = vmatpush2.msra.mxu0 0.0
        %290 = vmatprep.subr.mxu0 0.0
        %291 = vmatpush2.msra.mxu0 0.0
        %292 = vmatprep.subr.mxu0 0.0
        %293 = vmatpush2.msra.mxu0 0.0
        %294 = vmatprep.subr.mxu0 0.0
        %295 = vmatpush2.msra.mxu0 0.0
        %296 = vmatprep.subr.mxu0 0.0
        %297 = vmatpush2.msra.mxu0 0.0
        %298 = vmatprep.subr.mxu0 0.0
        %299 = vmatpush2.msra.mxu0 0.0
        %300 = vmatprep.subr.mxu0 0.0
        %301 = vmatpush2.msra.mxu0 0.0
        %302 = vmatprep.subr.mxu0 0.0
        %303 = vmatpush2.msra.mxu0 0.0
        %304 = vmatprep.subr.mxu0 0.0
        %305 = vmatpush2.msra.mxu0 0.0
        %306 = vmatprep.mubr.f32.mxu0 0.0
        %307 = vmatmul.mubr.f32.gmra.mxu0 %v224
        %v308 = vpop.f32.mrf.mxu0
        %v309 = vadd.f32 0.0, %v308
        %v310 = vpop.f32.mrf.mxu0
        %311 = vmatprep.mubr.f32.mxu0 0.0
        %312 = vmatmul.mubr.f32.gmra.mxu0 %v225
        %v313 = vpop.f32.mrf.mxu0
        %v314 = vadd.f32 0.0, %v313
        %v315 = vpop.f32.mrf.mxu0
        %316 = vdwg.mxu0
        %v317 = vadd.f32 %v222, %v309
        %v318 = vadd.f32 %v223, %v314
        %319 = vst [vmem:[%s212] sm:$0xff] %v317
        %320 = vst [vmem:[%s212 + $0x8] sm:$0xff] %v318
        %s321 = sand.u32 %s105, 1
        %s322 = scalar_lea.sflag [#allocation4], %s321
        %s323 = sand.u32 %s105, 1
        %s324 = smul.addr %s323, 16
        %s325 = scalar_lea.vmem [#allocation7], %s324
        // Predicated region
        $region41: #{tpu_custom_call.1} parent=27 // pred_check
          %p326 = pneg %p115
        $region42: #{tpu_custom_call.1} parent=27 // pred_check_branch
          %328 = sbr.rel (%p326) target = $region44
        $region43: #{tpu_custom_call.1} parent=27 // pred_region
          %s329 = smul.u32 2, %s25
          %s331 = ssub.s32 256, 256
          %332 = vsyncadd %s322, %s331
          %s333 = smul.addr %s329, 2
          %s334 = sadd.s32 %s26, %s333
          %s335 = smul.addr %s334, 128
          %s336 = scalar_lea.hbm %s2, %s335
          %s337 = sshll.u32 %s325, 4
          %s338 = int_to_ptr.vmem [resolvable:$true] %s337
          %343 = dma.vmem_to_hbm [thread:$0]  %s338, 256, %s336, %s322, 128, 256, 8
        $region44: #{tpu_custom_call.1} parent=27 // pred_fallthru
          _
      $region28: #{tpu_custom_call.1} parent=5 // pred_fallthru
        _
      %p344 = scmp.le.s32.totalorder 2, %s15
      // Predicated region
      $region45: #{tpu_custom_call.1} parent=5 // pred_check
        %p345 = pneg %p344
      $region46: #{tpu_custom_call.1} parent=5 // pred_check_branch
        %347 = sbr.rel (%p345) target = $region48
      $region47: #{tpu_custom_call.1} parent=5 // pred_region
        %s348 = ssub.s32 %s15, 2
        // Predicated region
        $region49: #{tpu_custom_call.1} parent=47 // pred_check
          %p349 = pneg %p121
        $region50: #{tpu_custom_call.1} parent=47 // pred_check_branch
          %351 = sbr.rel (%p349) target = $region52
        $region51: #{tpu_custom_call.1} parent=47 // pred_region
          %s352 = sand.u32 %s106, 1
          %s353 = scalar_lea.sflag [#allocation4], %s352
          %s354 = sand.u32 %s106, 1
          %s355 = smul.addr %s354, 16
          %s356 = scalar_lea.vmem [#allocation7], %s355
          %357 = dma.done %s353, 256
        $region52: #{tpu_custom_call.1} parent=47 // pred_fallthru
          _
      $region48: #{tpu_custom_call.1} parent=5 // pred_fallthru
        _
    $region6: #{tpu_custom_call.1} parent=1 // loop_footer
      %s19 = sadd.s32 1, %s15
    $region7: #{tpu_custom_call.1} parent=1 // loop_footer_branch
      %14 = sbr.rel target = $region3
    $region8: #{tpu_custom_call.1} parent=1 // loop_exit
      _
    %358 = vsyncpa [#allocation3], 1
    %s359 = scalar_lea.sflag [#allocation3], 1
    %360 = vsyncpa %s359, 1
    %361 = vsyncpa [#allocation6], 1
    %s362 = scalar_lea.sflag [#allocation6], 1
    %363 = vsyncpa %s362, 1
    %364 = vsyncpa [#allocation4], 1
    %s365 = scalar_lea.sflag [#allocation4], 1
    %366 = vsyncpa %s365, 1

</llo_original>
